<compile_context>
chip_gen: v7x
topology: tpu7x:2x2x1
jax: 0.10.0
libtpu: 0.0.40
codegen_flags: <defaults>
</compile_context>

<pallas_src>
import functools
import math

import jax
import jax.numpy as jnp
from jax import lax
from jax.experimental import pallas as pl
from jax.experimental.pallas import tpu as pltpu

_LANE = 128
_SUBLANE = 8


def _round_up(x, m):
    return (x + m - 1) // m * m


def _tpu_generation():
    """Best-effort TPU generation (5/6/7, ...). 0 when unknown (safe fallbacks)."""
    try:
        kind = jax.devices()[0].device_kind.lower()
    except Exception:
        return 0
    for g in (7, 6, 5, 4, 3, 2):
        if f"v{g}" in kind:
            return g
    return 0


def _vmem_capacity_bytes():
    try:
        cap = int(pltpu.get_tpu_info().vmem_capacity_bytes)
        if cap > 0:
            return cap
    except Exception:
        pass
    # 64 MiB per TensorCore on v7x, 128 MiB on earlier generations.
    return (64 if _tpu_generation() >= 7 else 128) * 1024 * 1024


def _dws_kernel(x_ref, wdw_ref, wpw_ref, o_ref, *,
                K, s, TH, Wo_t, acc_dtype, mxu_dtype, use_mxu):
    """One (batch x row-tile) grid step.

    x_ref:   (1, s*s, P_win, Wpp, Cp_in)  phase-split overlapping window
    wdw_ref: (K, K, Cp_in)                depthwise taps (pre-cast)
    wpw_ref: (Cp_in, Cp_out)              pointwise weights (pre-cast)
    o_ref:   (1, TH, Wo_t, Cp_out)
    """
    cp_in = x_ref.shape[-1]
    cp_out = o_ref.shape[-1]

    def _tree(lo, hi, leaf):
        # Balanced pairwise sum: partials stay in vregs, no serial
        # read-modify-write accumulator chain (v5e store-slot relief).
        if hi - lo == 1:
            return leaf(lo)
        mid = (lo + hi) // 2
        return _tree(lo, mid, leaf) + _tree(mid, hi, leaf)

    def _tap(i):
        kh, kw = divmod(i, K)
        p = (kh % s) * s + (kw % s)          # phase plane of this tap
        qh, qw = kh // s, kw // s            # offsets inside the phase plane
        # Pure contiguous offset slice — the wrapper's phase split removed all
        # stride-s gathers and the halo concatenate.
        patch = x_ref[0, p, pl.ds(qh, TH), pl.ds(qw, Wo_t), :]
        if patch.dtype != acc_dtype:
            patch = patch.astype(acc_dtype)
        return patch * wdw_ref[kh, kw, :]

    acc = _tree(0, K * K, _tap)              # (TH, Wo_t, cp_in)

    if use_mxu:
        # Pointwise 1x1 conv as one MXU matmul with f32 accumulation.
        # (bf16 acc -> bf16 MXU operands is the documented bf16 trade-off.)
        z = acc.reshape(TH * Wo_t, cp_in)
        if z.dtype != mxu_dtype:
            z = z.astype(mxu_dtype)
        y = jnp.dot(z, wpw_ref[...], preferred_element_type=jnp.float32)
        o_ref[0] = y.reshape(TH, Wo_t, cp_out).astype(o_ref.dtype)
    else:
        # Small-channel path: Cin broadcast-FMA passes on the VPU (f32).
        acc = acc.astype(jnp.float32)

        def _pw(ci):
            return acc[:, :, ci:ci + 1] * wpw_ref[ci, :]

        y = _tree(0, cp_in, _pw)             # (TH, Wo_t, cp_out), f32
        o_ref[0] = y.astype(o_ref.dtype)


def _pick_row_tile(Ho, s, K, Wpp, Wo_t, Cp_in, Cp_out, in_itemsize, out_itemsize,
                   acc_itemsize, mxu_itemsize, n_in_buffers, budget_bytes):
    """Largest multiple-of-8 output-row tile whose working set fits the budget."""
    qh = (K - 1) // s
    ho8 = _round_up(Ho, _SUBLANE)
    tree_live = int(math.ceil(math.log2(max(K * K, 2)))) + 2
    best = _SUBLANE
    th = _SUBLANE
    while th <= ho8:
        p_win = th + qh
        est = (n_in_buffers * s * s * p_win * Wpp * Cp_in * in_itemsize  # input bufs
               + 2 * th * Wo_t * Cp_out * out_itemsize                   # output bufs
               + 2 * (K * K * Cp_in * acc_itemsize + Cp_in * Cp_out * 4) # weight bufs
               + tree_live * th * Wo_t * Cp_in * acc_itemsize            # tap/tree temps
               + th * Wo_t * Cp_in * mxu_itemsize                        # matmul operand
               + 2 * th * Wo_t * Cp_out * 4)                             # result + cast
        if est > budget_bytes:
            break
        best = th
        th += _SUBLANE
    return min(best, ho8)


def dws_conv(x_nchw, weight_dw, weight_pw, stride, pad=0, *,
             tile_rows=None, vmem_budget_bytes=None, vmem_limit_bytes=None,
             depthwise_dtype=None, pointwise_bf16=False, input_buffers=2,
             nchw_output=True, mxu_channel_threshold=64):
    """Depthwise-separable conv matching DwsConv.forward.

    x_nchw:    (N, Cin, H, W)
    weight_dw: (Cin, 1, K, K)
    weight_pw: (Cin, Cout, 1, 1)
    """
    N, Cin, H, W = map(int, x_nchw.shape)
    K = int(weight_dw.shape[-1])
    Cout = int(weight_pw.shape[1])
    s = int(stride)
    pad = int(pad)
    assert tuple(weight_dw.shape) == (Cin, 1, K, K)
    assert tuple(weight_pw.shape) == (Cin, Cout, 1, 1)

    Hp, Wp = H + 2 * pad, W + 2 * pad
    Ho = (Hp - K) // s + 1
    Wo = (Wp - K) // s + 1
    assert Ho > 0 and Wo > 0, "empty output"

    gen = _tpu_generation()
    in_dtype = x_nchw.dtype

    # Depthwise compute dtype: bf16 on bf16-VALU chips (v6e/v7x) for bf16
    # inputs, else f32 (exact for f32 inputs; emulation-free on v5e).
    if depthwise_dtype is None:
        acc_dtype = (jnp.bfloat16
                     if (in_dtype == jnp.bfloat16 and gen >= 6) else jnp.float32)
    else:
        acc_dtype = jnp.dtype(depthwise_dtype)
    mxu_dtype = (jnp.bfloat16
                 if (in_dtype == jnp.bfloat16 or pointwise_bf16) else jnp.float32)

    # Channel-padding gate (review item 9): only widen to the 128-lane width
    # when channels are large enough to make the MXU worthwhile.
    use_mxu = Cin >= int(mxu_channel_threshold)
    if use_mxu:
        Cp_in = _round_up(Cin, _LANE)
        Cp_out = _round_up(Cout, _LANE)
    else:
        Cp_in, Cp_out = Cin, Cout

    # Output geometry / phase-split geometry.
    Wo_t = _round_up(Wo, _SUBLANE)
    qh = (K - 1) // s                   # max in-phase row offset of a tap
    qw = (K - 1) // s                   # max in-phase col offset of a tap
    Wpp = _round_up(max(Wo_t + qw, pl.cdiv(Wp, s)), _SUBLANE)
    W_tot = s * Wpp

    # Generation-aware VMEM budgets (review items 5/6/7).
    cap = _vmem_capacity_bytes()
    if vmem_limit_bytes is None:
        vmem_limit_bytes = min(cap - 8 * 1024 * 1024, cap * 7 // 8)
    if vmem_budget_bytes is None:
        vmem_budget_bytes = vmem_limit_bytes // 2

    in_is = jnp.dtype(in_dtype).itemsize
    acc_is = jnp.dtype(acc_dtype).itemsize
    mxu_is = jnp.dtype(mxu_dtype).itemsize if use_mxu else 4

    if tile_rows is None:
        TH = _pick_row_tile(Ho, s, K, Wpp, Wo_t, Cp_in, Cp_out,
                            in_is, in_is, acc_is, mxu_is,
                            max(int(input_buffers), 2), vmem_budget_bytes)
    else:
        TH = max(_SUBLANE, _round_up(int(tile_rows), _SUBLANE))
    TH = min(TH, _round_up(Ho, _SUBLANE))
    T = pl.cdiv(Ho, TH)
    Ho_pad = T * TH
    P_win = TH + qh                     # phase-plane rows per tile (incl. halo)

    Hpp = max(T * TH + qh, pl.cdiv(Hp, s))
    H_tot = s * Hpp
    # Correctness guards: every window position is covered by real or zero
    # rows/cols (no OOB / stale reads); see review correctness concern #2.
    assert Hpp >= T * TH + qh and Wpp >= Wo_t + qw
    assert H_tot >= Hp and W_tot >= Wp

    PH = s * s

    # --- single wrapper relayout (fused by XLA): NCHW->NHWC, conv zero-pad,
    # alignment + channel pad, stride phase-split of H and W, and the
    # overlapping per-tile row windows (only `qh` duplicated rows per tile).
    x = jnp.transpose(x_nchw, (0, 2, 3, 1))
    x = jnp.pad(x, ((0, 0), (pad, H_tot - H - pad), (pad, W_tot - W - pad),
                    (0, Cp_in - Cin)))
    x = x.reshape(N, Hpp, s, Wpp, s, Cp_in)             # h=i*s+ph, w=j*s+pw
    x = x.transpose(0, 2, 4, 1, 3, 5).reshape(N, PH, Hpp, Wpp, Cp_in)
    pos = (jnp.arange(T) * TH)[:, None] + jnp.arange(P_win)[None, :]
    x = jnp.take(x, pos.reshape(-1), axis=2)            # (N, PH, T*P_win, Wpp, C)
    x = x.reshape(N, PH, T, P_win, Wpp, Cp_in)
    x = jnp.transpose(x, (0, 2, 1, 3, 4, 5)).reshape(N * T, PH, P_win, Wpp, Cp_in)

    # Weights: padded + cast once in the wrapper (review item 8).
    wdw = jnp.transpose(weight_dw[:, 0, :, :], (1, 2, 0))            # (K, K, Cin)
    wdw = jnp.pad(wdw, ((0, 0), (0, 0), (0, Cp_in - Cin))).astype(acc_dtype)
    wpw = weight_pw[:, :, 0, 0]                                      # (Cin, Cout)
    if use_mxu:
        wpw = jnp.pad(wpw, ((0, Cp_in - Cin), (0, Cp_out - Cout))).astype(mxu_dtype)
    else:
        wpw = wpw.astype(jnp.float32)

    kernel = functools.partial(_dws_kernel, K=K, s=s, TH=TH, Wo_t=Wo_t,
                               acc_dtype=acc_dtype, mxu_dtype=mxu_dtype,
                               use_mxu=use_mxu)

    x_block = (1, PH, P_win, Wpp, Cp_in)
    x_index = lambda n, t: (n * T + t, 0, 0, 0, 0)
    if int(input_buffers) != 2:
        in_spec_x = pl.BlockSpec(x_block, x_index,
                                 pipeline_mode=pl.Buffered(int(input_buffers)))
    else:
        in_spec_x = pl.BlockSpec(x_block, x_index)

    out = pl.pallas_call(
        kernel,
        out_shape=jax.ShapeDtypeStruct((N, Ho_pad, Wo_t, Cp_out), in_dtype),
        grid_spec=pltpu.PrefetchScalarGridSpec(
            num_scalar_prefetch=0,
            grid=(N, T),
            in_specs=[
                in_spec_x,
                pl.BlockSpec((K, K, Cp_in), lambda n, t: (0, 0, 0)),
                pl.BlockSpec(tuple(wpw.shape), lambda n, t: (0, 0)),
            ],
            out_specs=pl.BlockSpec((1, TH, Wo_t, Cp_out),
                                   lambda n, t: (n, t, 0, 0)),
        ),
        compiler_params=pltpu.CompilerParams(
            dimension_semantics=("parallel", "parallel"),
            vmem_limit_bytes=int(vmem_limit_bytes)),
    )(x, wdw, wpw)

    # Crop alignment padding; transpose back to NCHW only if requested.
    out = out[:, :Ho, :Wo, :Cout]
    if nchw_output:
        out = jnp.transpose(out, (0, 3, 1, 2))
    return out


def _reference(x_nchw, weight_dw, weight_pw, stride, pad):
    """Pure-JAX reference (f32, highest precision) for correctness checking."""
    Cin = x_nchw.shape[1]
    x = x_nchw.astype(jnp.float32)
    if pad:
        x = jnp.pad(x, ((0, 0), (0, 0), (pad, pad), (pad, pad)))
    dw = lax.conv_general_dilated(
        x, weight_dw.astype(jnp.float32),
        window_strides=(stride, stride), padding="VALID",
        dimension_numbers=("NCHW", "OIHW", "NCHW"),
        feature_group_count=Cin,
        precision=lax.Precision.HIGHEST)
    return jnp.einsum("nihw,io->nohw", dw,
                      weight_pw[:, :, 0, 0].astype(jnp.float32),
                      precision=lax.Precision.HIGHEST)


def _check(name, x, wdw, wpw, stride, pad, atol=1e-4, rtol=1e-4, **kw):
    out = jax.block_until_ready(dws_conv(x, wdw, wpw, stride, pad, **kw))
    ref = _reference(x, wdw, wpw, stride, pad)
    assert out.shape == ref.shape, (name, out.shape, ref.shape)
    out32 = out.astype(jnp.float32)
    err = float(jnp.max(jnp.abs(out32 - ref)))
    assert jnp.allclose(out32, ref, atol=atol, rtol=rtol), (name, err)


if __name__ == "__main__":
    key = jax.random.PRNGKey(0)

    # Primary config implied by the module: N=2, Cin=4, 16x16, K=3, s=2, pad=1, Cout=8.
    k1, k2, k3, key = jax.random.split(key, 4)
    x = jax.random.normal(k1, (2, 4, 16, 16), jnp.float32)
    wdw = jax.random.normal(k2, (4, 1, 3, 3), jnp.float32) * 0.1
    wpw = jax.random.normal(k3, (4, 8, 1, 1), jnp.float32) * 0.1
    _check("k3_s2_p1", x, wdw, wpw, stride=2, pad=1)

    # stride=1, no pad, odd spatial size (alignment padding + crop).
    k1, k2, k3, key = jax.random.split(key, 4)
    x = jax.random.normal(k1, (1, 3, 13, 13), jnp.float32)
    wdw = jax.random.normal(k2, (3, 1, 3, 3), jnp.float32) * 0.1
    wpw = jax.random.normal(k3, (3, 5, 1, 1), jnp.float32) * 0.1
    _check("k3_s1_p0", x, wdw, wpw, stride=1, pad=0)

    # Forced multi-row-tile case (T=2): overlapping windows across tiles.
    k1, k2, k3, key = jax.random.split(key, 4)
    x = jax.random.normal(k1, (1, 4, 32, 32), jnp.float32)
    wdw = jax.random.normal(k2, (4, 1, 3, 3), jnp.float32) * 0.1
    wpw = jax.random.normal(k3, (4, 8, 1, 1), jnp.float32) * 0.1
    _check("k3_s2_p1_tiled", x, wdw, wpw, stride=2, pad=1, tile_rows=8)

    # bf16 activations: exercises the bf16 depthwise path on v6e/v7x
    # (f32 depthwise on v5e); loose tolerance by design.
    k1, k2, k3, key = jax.random.split(key, 4)
    x = jax.random.normal(k1, (2, 4, 16, 16), jnp.float32).astype(jnp.bfloat16)
    wdw = jax.random.normal(k2, (4, 1, 3, 3), jnp.float32) * 0.1
    wpw = jax.random.normal(k3, (4, 8, 1, 1), jnp.float32) * 0.1
    _check("k3_s2_p1_bf16", x, wdw, wpw, stride=2, pad=1, atol=2e-2, rtol=2e-2)

    # Large-channel config: exercises the 128-lane-padded MXU pointwise path.
    k1, k2, k3, key = jax.random.split(key, 4)
    x = jax.random.normal(k1, (1, 128, 12, 12), jnp.float32)
    wdw = jax.random.normal(k2, (128, 1, 3, 3), jnp.float32) * 0.1
    wpw = jax.random.normal(k3, (128, 128, 1, 1), jnp.float32) * 0.05
    _check("k3_s1_p0_mxu", x, wdw, wpw, stride=1, pad=0, atol=2e-2, rtol=2e-2)

    print("KERNEL_OK")
</pallas_src>

<mosaic_0001>
module attributes {stable_mosaic.version = 11 : i64} {
  func.func @_dws_kernel(%arg0: i32, %arg1: i32, %arg2: memref<1x4x9x16x4xf32, #tpu.memory_space<vmem>>, %arg3: memref<3x3x4xf32, #tpu.memory_space<vmem>>, %arg4: memref<4x8xf32, #tpu.memory_space<vmem>>, %arg5: memref<1x8x8x8xf32, #tpu.memory_space<vmem>>) attributes {dimension_semantics = [#tpu.dimension_semantics<parallel>, #tpu.dimension_semantics<parallel>], iteration_bounds = array<i64: 2, 1>, scalar_prefetch = 0 : i64, scratch_operands = 0 : i64, tpu.core_type = #tpu.core_type<tc>, window_params = [{transform_indices = @transform_0, window_bounds = array<i64: 1, 4, 9, 16, 4>}, {pipeline_mode = #tpu.pipeline_mode<synchronous>, transform_indices = @transform_1, window_bounds = array<i64: 3, 3, 4>}, {pipeline_mode = #tpu.pipeline_mode<synchronous>, transform_indices = @transform_2, window_bounds = array<i64: 4, 8>}, {transform_indices = @transform_3, window_bounds = array<i64: 1, 8, 8, 8>}]} {
    %c0 = arith.constant 0 : index
    %c0_0 = arith.constant 0 : index
    %c0_1 = arith.constant 0 : index
    %c0_2 = arith.constant 0 : index
    %c0_3 = arith.constant 0 : index
    %0 = vector.load %arg2[%c0, %c0_0, %c0_1, %c0_2, %c0_3] : memref<1x4x9x16x4xf32, #tpu.memory_space<vmem>>, vector<1x1x8x8x4xf32>
    %1 = vector.shape_cast %0 : vector<1x1x8x8x4xf32> to vector<8x8x4xf32>
    %c0_4 = arith.constant 0 : index
    %c0_5 = arith.constant 0 : index
    %c0_6 = arith.constant 0 : index
    %2 = vector.load %arg3[%c0_4, %c0_5, %c0_6] : memref<3x3x4xf32, #tpu.memory_space<vmem>>, vector<1x1x4xf32>
    %3 = vector.shape_cast %2 : vector<1x1x4xf32> to vector<4xf32>
    %4 = vector.shape_cast %3 : vector<4xf32> to vector<1x1x4xf32>
    %5 = vector.broadcast %4 : vector<1x1x4xf32> to vector<8x8x4xf32>
    %6 = arith.mulf %1, %5 : vector<8x8x4xf32>
    %c0_7 = arith.constant 0 : index
    %c1 = arith.constant 1 : index
    %c0_8 = arith.constant 0 : index
    %c0_9 = arith.constant 0 : index
    %c0_10 = arith.constant 0 : index
    %7 = vector.load %arg2[%c0_7, %c1, %c0_8, %c0_9, %c0_10] : memref<1x4x9x16x4xf32, #tpu.memory_space<vmem>>, vector<1x1x8x8x4xf32>
    %8 = vector.shape_cast %7 : vector<1x1x8x8x4xf32> to vector<8x8x4xf32>
    %c0_11 = arith.constant 0 : index
    %c1_12 = arith.constant 1 : index
    %c0_13 = arith.constant 0 : index
    %9 = vector.load %arg3[%c0_11, %c1_12, %c0_13] : memref<3x3x4xf32, #tpu.memory_space<vmem>>, vector<1x1x4xf32>
    %10 = vector.shape_cast %9 : vector<1x1x4xf32> to vector<4xf32>
    %11 = vector.shape_cast %10 : vector<4xf32> to vector<1x1x4xf32>
    %12 = vector.broadcast %11 : vector<1x1x4xf32> to vector<8x8x4xf32>
    %13 = arith.mulf %8, %12 : vector<8x8x4xf32>
    %14 = arith.addf %6, %13 : vector<8x8x4xf32>
    %c0_14 = arith.constant 0 : index
    %c0_15 = arith.constant 0 : index
    %c0_16 = arith.constant 0 : index
    %c1_17 = arith.constant 1 : index
    %c0_18 = arith.constant 0 : index
    %15 = vector.load %arg2[%c0_14, %c0_15, %c0_16, %c1_17, %c0_18] : memref<1x4x9x16x4xf32, #tpu.memory_space<vmem>>, vector<1x1x8x8x4xf32>
    %16 = vector.shape_cast %15 : vector<1x1x8x8x4xf32> to vector<8x8x4xf32>
    %c0_19 = arith.constant 0 : index
    %c2 = arith.constant 2 : index
    %c0_20 = arith.constant 0 : index
    %17 = vector.load %arg3[%c0_19, %c2, %c0_20] : memref<3x3x4xf32, #tpu.memory_space<vmem>>, vector<1x1x4xf32>
    %18 = vector.shape_cast %17 : vector<1x1x4xf32> to vector<4xf32>
    %19 = vector.shape_cast %18 : vector<4xf32> to vector<1x1x4xf32>
    %20 = vector.broadcast %19 : vector<1x1x4xf32> to vector<8x8x4xf32>
    %21 = arith.mulf %16, %20 : vector<8x8x4xf32>
    %c0_21 = arith.constant 0 : index
    %c2_22 = arith.constant 2 : index
    %c0_23 = arith.constant 0 : index
    %c0_24 = arith.constant 0 : index
    %c0_25 = arith.constant 0 : index
    %22 = vector.load %arg2[%c0_21, %c2_22, %c0_23, %c0_24, %c0_25] : memref<1x4x9x16x4xf32, #tpu.memory_space<vmem>>, vector<1x1x8x8x4xf32>
    %23 = vector.shape_cast %22 : vector<1x1x8x8x4xf32> to vector<8x8x4xf32>
    %c1_26 = arith.constant 1 : index
    %c0_27 = arith.constant 0 : index
    %c0_28 = arith.constant 0 : index
    %24 = vector.load %arg3[%c1_26, %c0_27, %c0_28] : memref<3x3x4xf32, #tpu.memory_space<vmem>>, vector<1x1x4xf32>
    %25 = vector.shape_cast %24 : vector<1x1x4xf32> to vector<4xf32>
    %26 = vector.shape_cast %25 : vector<4xf32> to vector<1x1x4xf32>
    %27 = vector.broadcast %26 : vector<1x1x4xf32> to vector<8x8x4xf32>
    %28 = arith.mulf %23, %27 : vector<8x8x4xf32>
    %29 = arith.addf %21, %28 : vector<8x8x4xf32>
    %30 = arith.addf %14, %29 : vector<8x8x4xf32>
    %c0_29 = arith.constant 0 : index
    %c3 = arith.constant 3 : index
    %c0_30 = arith.constant 0 : index
    %c0_31 = arith.constant 0 : index
    %c0_32 = arith.constant 0 : index
    %31 = vector.load %arg2[%c0_29, %c3, %c0_30, %c0_31, %c0_32] : memref<1x4x9x16x4xf32, #tpu.memory_space<vmem>>, vector<1x1x8x8x4xf32>
    %32 = vector.shape_cast %31 : vector<1x1x8x8x4xf32> to vector<8x8x4xf32>
    %c1_33 = arith.constant 1 : index
    %c1_34 = arith.constant 1 : index
    %c0_35 = arith.constant 0 : index
    %33 = vector.load %arg3[%c1_33, %c1_34, %c0_35] : memref<3x3x4xf32, #tpu.memory_space<vmem>>, vector<1x1x4xf32>
    %34 = vector.shape_cast %33 : vector<1x1x4xf32> to vector<4xf32>
    %35 = vector.shape_cast %34 : vector<4xf32> to vector<1x1x4xf32>
    %36 = vector.broadcast %35 : vector<1x1x4xf32> to vector<8x8x4xf32>
    %37 = arith.mulf %32, %36 : vector<8x8x4xf32>
    %c0_36 = arith.constant 0 : index
    %c2_37 = arith.constant 2 : index
    %c0_38 = arith.constant 0 : index
    %c1_39 = arith.constant 1 : index
    %c0_40 = arith.constant 0 : index
    %38 = vector.load %arg2[%c0_36, %c2_37, %c0_38, %c1_39, %c0_40] : memref<1x4x9x16x4xf32, #tpu.memory_space<vmem>>, vector<1x1x8x8x4xf32>
    %39 = vector.shape_cast %38 : vector<1x1x8x8x4xf32> to vector<8x8x4xf32>
    %c1_41 = arith.constant 1 : index
    %c2_42 = arith.constant 2 : index
    %c0_43 = arith.constant 0 : index
    %40 = vector.load %arg3[%c1_41, %c2_42, %c0_43] : memref<3x3x4xf32, #tpu.memory_space<vmem>>, vector<1x1x4xf32>
    %41 = vector.shape_cast %40 : vector<1x1x4xf32> to vector<4xf32>
    %42 = vector.shape_cast %41 : vector<4xf32> to vector<1x1x4xf32>
    %43 = vector.broadcast %42 : vector<1x1x4xf32> to vector<8x8x4xf32>
    %44 = arith.mulf %39, %43 : vector<8x8x4xf32>
    %45 = arith.addf %37, %44 : vector<8x8x4xf32>
    %c0_44 = arith.constant 0 : index
    %c0_45 = arith.constant 0 : index
    %c1_46 = arith.constant 1 : index
    %c0_47 = arith.constant 0 : index
    %c0_48 = arith.constant 0 : index
    %46 = vector.load %arg2[%c0_44, %c0_45, %c1_46, %c0_47, %c0_48] : memref<1x4x9x16x4xf32, #tpu.memory_space<vmem>>, vector<1x1x8x8x4xf32>
    %47 = vector.shape_cast %46 : vector<1x1x8x8x4xf32> to vector<8x8x4xf32>
    %c2_49 = arith.constant 2 : index
    %c0_50 = arith.constant 0 : index
    %c0_51 = arith.constant 0 : index
    %48 = vector.load %arg3[%c2_49, %c0_50, %c0_51] : memref<3x3x4xf32, #tpu.memory_space<vmem>>, vector<1x1x4xf32>
    %49 = vector.shape_cast %48 : vector<1x1x4xf32> to vector<4xf32>
    %50 = vector.shape_cast %49 : vector<4xf32> to vector<1x1x4xf32>
    %51 = vector.broadcast %50 : vector<1x1x4xf32> to vector<8x8x4xf32>
    %52 = arith.mulf %47, %51 : vector<8x8x4xf32>
    %c0_52 = arith.constant 0 : index
    %c1_53 = arith.constant 1 : index
    %c1_54 = arith.constant 1 : index
    %c0_55 = arith.constant 0 : index
    %c0_56 = arith.constant 0 : index
    %53 = vector.load %arg2[%c0_52, %c1_53, %c1_54, %c0_55, %c0_56] : memref<1x4x9x16x4xf32, #tpu.memory_space<vmem>>, vector<1x1x8x8x4xf32>
    %54 = vector.shape_cast %53 : vector<1x1x8x8x4xf32> to vector<8x8x4xf32>
    %c2_57 = arith.constant 2 : index
    %c1_58 = arith.constant 1 : index
    %c0_59 = arith.constant 0 : index
    %55 = vector.load %arg3[%c2_57, %c1_58, %c0_59] : memref<3x3x4xf32, #tpu.memory_space<vmem>>, vector<1x1x4xf32>
    %56 = vector.shape_cast %55 : vector<1x1x4xf32> to vector<4xf32>
    %57 = vector.shape_cast %56 : vector<4xf32> to vector<1x1x4xf32>
    %58 = vector.broadcast %57 : vector<1x1x4xf32> to vector<8x8x4xf32>
    %59 = arith.mulf %54, %58 : vector<8x8x4xf32>
    %c0_60 = arith.constant 0 : index
    %c0_61 = arith.constant 0 : index
    %c1_62 = arith.constant 1 : index
    %c1_63 = arith.constant 1 : index
    %c0_64 = arith.constant 0 : index
    %60 = vector.load %arg2[%c0_60, %c0_61, %c1_62, %c1_63, %c0_64] : memref<1x4x9x16x4xf32, #tpu.memory_space<vmem>>, vector<1x1x8x8x4xf32>
    %61 = vector.shape_cast %60 : vector<1x1x8x8x4xf32> to vector<8x8x4xf32>
    %c2_65 = arith.constant 2 : index
    %c2_66 = arith.constant 2 : index
    %c0_67 = arith.constant 0 : index
    %62 = vector.load %arg3[%c2_65, %c2_66, %c0_67] : memref<3x3x4xf32, #tpu.memory_space<vmem>>, vector<1x1x4xf32>
    %63 = vector.shape_cast %62 : vector<1x1x4xf32> to vector<4xf32>
    %64 = vector.shape_cast %63 : vector<4xf32> to vector<1x1x4xf32>
    %65 = vector.broadcast %64 : vector<1x1x4xf32> to vector<8x8x4xf32>
    %66 = arith.mulf %61, %65 : vector<8x8x4xf32>
    %67 = arith.addf %59, %66 : vector<8x8x4xf32>
    %68 = arith.addf %52, %67 : vector<8x8x4xf32>
    %69 = arith.addf %45, %68 : vector<8x8x4xf32>
    %70 = arith.addf %30, %69 : vector<8x8x4xf32>
    %71 = vector.extract_strided_slice %70 {offsets = [0, 0, 0], sizes = [8, 8, 1], strides = [1, 1, 1]} : vector<8x8x4xf32> to vector<8x8x1xf32>
    %c0_68 = arith.constant 0 : index
    %c0_69 = arith.constant 0 : index
    %72 = vector.load %arg4[%c0_68, %c0_69] : memref<4x8xf32, #tpu.memory_space<vmem>>, vector<1x8xf32>
    %73 = vector.shape_cast %72 : vector<1x8xf32> to vector<8xf32>
    %74 = vector.shape_cast %73 : vector<8xf32> to vector<1x1x8xf32>
    %75 = vector.broadcast %71 : vector<8x8x1xf32> to vector<8x8x8xf32>
    %76 = vector.broadcast %74 : vector<1x1x8xf32> to vector<8x8x8xf32>
    %77 = arith.mulf %75, %76 : vector<8x8x8xf32>
    %78 = vector.extract_strided_slice %70 {offsets = [0, 0, 1], sizes = [8, 8, 1], strides = [1, 1, 1]} : vector<8x8x4xf32> to vector<8x8x1xf32>
    %c1_70 = arith.constant 1 : index
    %c0_71 = arith.constant 0 : index
    %79 = vector.load %arg4[%c1_70, %c0_71] : memref<4x8xf32, #tpu.memory_space<vmem>>, vector<1x8xf32>
    %80 = vector.shape_cast %79 : vector<1x8xf32> to vector<8xf32>
    %81 = vector.shape_cast %80 : vector<8xf32> to vector<1x1x8xf32>
    %82 = vector.broadcast %78 : vector<8x8x1xf32> to vector<8x8x8xf32>
    %83 = vector.broadcast %81 : vector<1x1x8xf32> to vector<8x8x8xf32>
    %84 = arith.mulf %82, %83 : vector<8x8x8xf32>
    %85 = arith.addf %77, %84 : vector<8x8x8xf32>
    %86 = vector.extract_strided_slice %70 {offsets = [0, 0, 2], sizes = [8, 8, 1], strides = [1, 1, 1]} : vector<8x8x4xf32> to vector<8x8x1xf32>
    %c2_72 = arith.constant 2 : index
    %c0_73 = arith.constant 0 : index
    %87 = vector.load %arg4[%c2_72, %c0_73] : memref<4x8xf32, #tpu.memory_space<vmem>>, vector<1x8xf32>
    %88 = vector.shape_cast %87 : vector<1x8xf32> to vector<8xf32>
    %89 = vector.shape_cast %88 : vector<8xf32> to vector<1x1x8xf32>
    %90 = vector.broadcast %86 : vector<8x8x1xf32> to vector<8x8x8xf32>
    %91 = vector.broadcast %89 : vector<1x1x8xf32> to vector<8x8x8xf32>
    %92 = arith.mulf %90, %91 : vector<8x8x8xf32>
    %93 = vector.extract_strided_slice %70 {offsets = [0, 0, 3], sizes = [8, 8, 1], strides = [1, 1, 1]} : vector<8x8x4xf32> to vector<8x8x1xf32>
    %c3_74 = arith.constant 3 : index
    %c0_75 = arith.constant 0 : index
    %94 = vector.load %arg4[%c3_74, %c0_75] : memref<4x8xf32, #tpu.memory_space<vmem>>, vector<1x8xf32>
    %95 = vector.shape_cast %94 : vector<1x8xf32> to vector<8xf32>
    %96 = vector.shape_cast %95 : vector<8xf32> to vector<1x1x8xf32>
    %97 = vector.broadcast %93 : vector<8x8x1xf32> to vector<8x8x8xf32>
    %98 = vector.broadcast %96 : vector<1x1x8xf32> to vector<8x8x8xf32>
    %99 = arith.mulf %97, %98 : vector<8x8x8xf32>
    %100 = arith.addf %92, %99 : vector<8x8x8xf32>
    %101 = arith.addf %85, %100 : vector<8x8x8xf32>
    %c0_76 = arith.constant 0 : index
    %c0_77 = arith.constant 0 : index
    %c0_78 = arith.constant 0 : index
    %c0_79 = arith.constant 0 : index
    %102 = vector.load %arg5[%c0_76, %c0_77, %c0_78, %c0_79] : memref<1x8x8x8xf32, #tpu.memory_space<vmem>>, vector<1x8x8x8xf32>
    %103 = vector.shape_cast %102 : vector<1x8x8x8xf32> to vector<8x8x8xf32>
    %104 = vector.shape_cast %101 : vector<8x8x8xf32> to vector<1x8x8x8xf32>
    tpu.vector_store %arg5[%c0_76, %c0_77, %c0_78, %c0_79], %104 {strides = array<i32>} : memref<1x8x8x8xf32, #tpu.memory_space<vmem>>, vector<1x8x8x8xf32>,
    return
  }
  func.func @transform_0(%arg0: i32, %arg1: i32) -> (i32, i32, i32, i32, i32) {
    %c1_i32 = arith.constant 1 : i32
    %0 = arith.muli %arg0, %c1_i32 : i32
    %1 = arith.addi %0, %arg1 : i32
    %c0_i32 = arith.constant 0 : i32
    %c0_i32_0 = arith.constant 0 : i32
    %c0_i32_1 = arith.constant 0 : i32
    %c0_i32_2 = arith.constant 0 : i32
    %c0_i32_3 = arith.constant 0 : i32
    return %1, %c0_i32, %c0_i32_0, %c0_i32_1, %c0_i32_2 : i32, i32, i32, i32, i32
  }
  func.func @transform_1(%arg0: i32, %arg1: i32) -> (i32, i32, i32) {
    %c0_i32 = arith.constant 0 : i32
    %c0_i32_0 = arith.constant 0 : i32
    %c0_i32_1 = arith.constant 0 : i32
    %c0_i32_2 = arith.constant 0 : i32
    return %c0_i32, %c0_i32_0, %c0_i32_1 : i32, i32, i32
  }
  func.func @transform_2(%arg0: i32, %arg1: i32) -> (i32, i32) {
    %c0_i32 = arith.constant 0 : i32
    %c0_i32_0 = arith.constant 0 : i32
    %c0_i32_1 = arith.constant 0 : i32
    return %c0_i32, %c0_i32_0 : i32, i32
  }
  func.func @transform_3(%arg0: i32, %arg1: i32) -> (i32, i32, i32, i32) {
    %c0_i32 = arith.constant 0 : i32
    %c0_i32_0 = arith.constant 0 : i32
    %c0_i32_1 = arith.constant 0 : i32
    return %arg0, %arg1, %c0_i32, %c0_i32_0 : i32, i32, i32, i32
  }
}

</mosaic_0001>

<llo_original>
// kernel: tpu_custom_call.1
$region0: #{tpu_custom_call.1}
  #allocation0 [shape = 'u32[]', space=smem, size = 0x4, offset = 0x4, fixed_abs, tag = 'smem constant byte address 0x4 - core index']
  #allocation1 [shape = 'u32[144,128]{1,0:T(1,128)}', space=vmem, size = 0x12000, scoped, tag = 'internal scratch']
  %s0 = inlined_call_operand.hbm [shape: f32[2,4,9,16,4], index: 0, kind: input, shape index: {}]
  %s1 = inlined_call_operand.hbm [shape: f32[3,3,4], index: 1, kind: input, shape index: {}]
  %s2 = inlined_call_operand.hbm [shape: f32[4,8], index: 2, kind: input, shape index: {}]
  %s3 = inlined_call_operand.hbm [shape: f32[2,8,8,8], index: 3, kind: output, shape index: {}]
  %s4 = sld [smem:[#allocation0]]
  $region57: #{tpu_custom_call.1} parent=0
    _
  %s6 = ssub.s32 1, %s4
  %s7 = scalar_select 0, %s6, %s4
  $region1: #{tpu_custom_call.1} parent=0
    #allocation2 [shape = 'u8[589824]{0}', space=vmem, size = 0x90000, scoped, tag = 'input window, operand 0']
    #allocation3 [shape = 's32[2]{0}', space=sflag, size = 0x8, scoped, tag = 'scoped memory for tpu_custom_call.1']
    #allocation4 [shape = 's32[2]{0}', space=sflag, size = 0x8, scoped, tag = 'scoped memory for tpu_custom_call.1']
    #allocation5 [shape = 'u8[6144]{0}', space=vmem, size = 0x1800, scoped, tag = 'input window, operand 1, single buffered']
    #allocation6 [shape = 's32[1]{0}', space=sflag, size = 0x4, scoped, tag = 'scoped memory for tpu_custom_call.1']
    #allocation7 [shape = 'u8[2048]{0}', space=vmem, size = 0x800, scoped, tag = 'input window, operand 2, single buffered']
    #allocation8 [shape = 'u8[65536]{0}', space=vmem, size = 0x10000, scoped, tag = 'output window, operand 0']
    %8 = vsyncpa [#allocation3], 0
    %s9 = scalar_lea.sflag [#allocation3], 1
    %10 = vsyncpa %s9, 0
    %11 = vsyncpa [#allocation6], 0
    %12 = vsyncpa [#allocation4], 0
    %s13 = scalar_lea.sflag [#allocation4], 1
    %14 = vsyncpa %s13, 0
    loop: start=0, step=1, limit=4
    $region2: #{tpu_custom_call.1} parent=1 // loop_pre_header
      _
    $region3: #{tpu_custom_call.1} parent=1 // loop_header
      %s16 = sphi 0, %s20
      %p17 = scmp.ge.s32.totalorder %s16, 4
      %s23 = sphi 0, %s35
      %s24 = sphi 0, %s31
      %s25 = sphi 0, %s23
      %s26 = sphi 0, %s24
      %s27 = sphi 0, %s25
      %s28 = sphi 0, %s26
      %s40 = sphi 0, %s42
      %s43 = sphi 0, %s40
      %s44 = sphi 0, %s43
      %s60 = sphi 0, %s44
      %s64 = sphi 0, %s64
      %s66 = sphi 0, %s64
      %s67 = sphi 0, %s66
      %s81 = sphi 0, %s67
      %s85 = sphi 0, %s85
      %s87 = sphi 0, %s85
      %s88 = sphi 0, %s87
      %s102 = sphi 0, %s88
      %s110 = sphi 0, %s112
      %s113 = sphi 0, %s110
      %s114 = sphi 0, %s113
      %s130 = sphi 0, %s114
    $region4: #{tpu_custom_call.1} parent=1 // loop_header_branch
      %19 = sbr.rel (%p17) target = $region8
    $region5: #{tpu_custom_call.1} parent=1 // loop_body
      %s21 = ssub.s32 %s16, 1
      %s22 = ssub.s32 %s16, 2
      %s29 = sadd.s32 1, %s24
      %p30 = scmp.ge.s32.totalorder %s29, 1
      %s31 = scalar_select %p30, 0, %s29
      %s32 = sadd.s32 1, %s23
      %s33 = scalar_select %p30, %s32, %s23
      %p34 = scmp.ge.s32.totalorder %s33, 2
      %s35 = scalar_select %p34, 0, %s33
      %s36 = sadd.s32 %s23, %s24
      %s37 = sadd.s32 %s35, %s31
      %s38 = ssub.s32 %s36, %s37
      %p39 = scmp.eq.s32.totalorder %s38, 0
      %s41 = sadd.s32 %s40, 1
      %s42 = scalar_select %p39, %s40, %s41
      %p45 = pneg %p39
      %p46 = scmp.eq.s32.totalorder %s16, 1
      %p47 = por %p45, %p46
      %p48 = scmp.ne.s32.totalorder %s40, %s43
      %p49 = scmp.eq.s32.totalorder %s16, 0
      %p50 = por %p48, %p49
      %p51 = scmp.ne.s32.totalorder %s40, %s43
      %p52 = scmp.eq.s32.totalorder %s21, 1
      %p53 = por %p51, %p52
      %p54 = scmp.ne.s32.totalorder %s43, %s44
      %p55 = scmp.eq.s32.totalorder %s21, 0
      %p56 = por %p54, %p55
      %p57 = scmp.ne.s32.totalorder %s43, %s44
      %p58 = scmp.eq.s32.totalorder %s22, 1
      %p59 = por %p57, %p58
      %p61 = scmp.ne.s32.totalorder %s44, %s60
      %p62 = scmp.eq.s32.totalorder %s22, 0
      %p63 = por %p61, %p62
      %s65 = sadd.s32 %s64, 1
      %p68 = scmp.eq.s32.totalorder %s16, 1
      %p69 = scmp.ne.s32.totalorder %s64, %s66
      %p70 = scmp.eq.s32.totalorder %s16, 0
      %p71 = por %p69, %p70
      %p72 = scmp.ne.s32.totalorder %s64, %s66
      %p73 = scmp.eq.s32.totalorder %s21, 1
      %p74 = por %p72, %p73
      %p75 = scmp.ne.s32.totalorder %s66, %s67
      %p76 = scmp.eq.s32.totalorder %s21, 0
      %p77 = por %p75, %p76
      %p78 = scmp.ne.s32.totalorder %s66, %s67
      %p79 = scmp.eq.s32.totalorder %s22, 1
      %p80 = por %p78, %p79
      %p82 = scmp.ne.s32.totalorder %s67, %s81
      %p83 = scmp.eq.s32.totalorder %s22, 0
      %p84 = por %p82, %p83
      %s86 = sadd.s32 %s85, 1
      %p89 = scmp.eq.s32.totalorder %s16, 1
      %p90 = scmp.ne.s32.totalorder %s85, %s87
      %p91 = scmp.eq.s32.totalorder %s16, 0
      %p92 = por %p90, %p91
      %p93 = scmp.ne.s32.totalorder %s85, %s87
      %p94 = scmp.eq.s32.totalorder %s21, 1
      %p95 = por %p93, %p94
      %p96 = scmp.ne.s32.totalorder %s87, %s88
      %p97 = scmp.eq.s32.totalorder %s21, 0
      %p98 = por %p96, %p97
      %p99 = scmp.ne.s32.totalorder %s87, %s88
      %p100 = scmp.eq.s32.totalorder %s22, 1
      %p101 = por %p99, %p100
      %p103 = scmp.ne.s32.totalorder %s88, %s102
      %p104 = scmp.eq.s32.totalorder %s22, 0
      %p105 = por %p103, %p104
      %s106 = ssub.s32 %s23, %s35
      %s107 = ssub.s32 %s24, %s31
      %s108 = sor.u32 %s106, %s107
      %p109 = scmp.eq.s32.totalorder %s108, 0
      %s111 = sadd.s32 %s110, 1
      %s112 = scalar_select %p109, %s110, %s111
      %p115 = pneg %p109
      %p116 = scmp.eq.s32.totalorder %s16, 1
      %p117 = por %p115, %p116
      %p118 = scmp.ne.s32.totalorder %s110, %s113
      %p119 = scmp.eq.s32.totalorder %s16, 0
      %p120 = por %p118, %p119
      %p121 = scmp.ne.s32.totalorder %s110, %s113
      %p122 = scmp.eq.s32.totalorder %s21, 1
      %p123 = por %p121, %p122
      %p124 = scmp.ne.s32.totalorder %s113, %s114
      %p125 = scmp.eq.s32.totalorder %s21, 0
      %p126 = por %p124, %p125
      %p127 = scmp.ne.s32.totalorder %s113, %s114
      %p128 = scmp.eq.s32.totalorder %s22, 1
      %p129 = por %p127, %p128
      %p131 = scmp.ne.s32.totalorder %s114, %s130
      %p132 = scmp.eq.s32.totalorder %s22, 0
      %p133 = por %p131, %p132
      %p134 = scmp.le.s32.totalorder 1, %s16
      %p135 = scmp.lt.s32.totalorder %s16, 3
      %p136 = pnand %p134, %p135
      %p137 = pneg %p136
      // Predicated region
      $region9: #{tpu_custom_call.1} parent=5 // pred_check
        _
      $region10: #{tpu_custom_call.1} parent=5 // pred_check_branch
        %139 = sbr.rel (%p136) target = $region12
      $region11: #{tpu_custom_call.1} parent=5 // pred_region
        %s140 = ssub.s32 %s16, 1
        // Predicated region
        $region13: #{tpu_custom_call.1} parent=11 // pred_check
          %p141 = pneg %p77
        $region14: #{tpu_custom_call.1} parent=11 // pred_check_branch
          %143 = sbr.rel (%p141) target = $region16
        $region15: #{tpu_custom_call.1} parent=11 // pred_region
          %s145 = ssub.s32 192, 192
          %146 = vsyncadd [#allocation6], %s145
          %s147 = sshll.u32 [#allocation5], 4
          %s148 = int_to_ptr.vmem [resolvable:$true] %s147
          %153 = dma.hbm_to_vmem [thread:$0]  %s1, 192, %s148, [#allocation6], 64, 64, 4
        $region16: #{tpu_custom_call.1} parent=11 // pred_fallthru
          _
        // Predicated region
        $region17: #{tpu_custom_call.1} parent=11 // pred_check
          %p154 = pneg %p98
        $region18: #{tpu_custom_call.1} parent=11 // pred_check_branch
          %156 = sbr.rel (%p154) target = $region20
        $region19: #{tpu_custom_call.1} parent=11 // pred_region
          %s158 = ssub.s32 64, 64
          %159 = vsyncadd [#allocation6], %s158
          %s161 = sshll.u32 [#allocation7], 4
          %s162 = int_to_ptr.vmem [resolvable:$true] %s161
          %164 = dma.hbm_to_vmem [thread:$0]  %s2, 64, %s162, [#allocation6]
        $region20: #{tpu_custom_call.1} parent=11 // pred_fallthru
          _
      $region12: #{tpu_custom_call.1} parent=5 // pred_fallthru
        _
      %p165 = scmp.lt.s32.totalorder %s16, 2
      // Predicated region
      $region21: #{tpu_custom_call.1} parent=5 // pred_check
        %p166 = pneg %p165
      $region22: #{tpu_custom_call.1} parent=5 // pred_check_branch
        %168 = sbr.rel (%p166) target = $region24
      $region23: #{tpu_custom_call.1} parent=5 // pred_region
        // Predicated region
        $region25: #{tpu_custom_call.1} parent=23 // pred_check
          %p169 = pneg %p50
        $region26: #{tpu_custom_call.1} parent=23 // pred_check_branch
          %171 = sbr.rel (%p169) target = $region28
        $region27: #{tpu_custom_call.1} parent=23 // pred_region
          %s172 = sand.u32 %s40, 1
          %s173 = scalar_lea.sflag [#allocation3], %s172
          %s174 = sand.u32 %s40, 1
          %s175 = smul.addr %s174, 576
          %s176 = scalar_lea.vmem [#allocation2], %s175
          %s177 = sadd.s32 %s23, %s24
          %s179 = ssub.s32 9216, 9216
          %180 = vsyncadd %s173, %s179
          %s181 = smul.addr %s177, 72
          %s182 = smul.addr %s181, 128
          %s183 = scalar_lea.hbm %s0, %s182
          %s184 = sshll.u32 %s176, 4
          %s185 = int_to_ptr.vmem [resolvable:$true] %s184
          %190 = dma.hbm_to_vmem [thread:$0]  %s183, 9216, %s185, %s173, 128, 128, 8
        $region28: #{tpu_custom_call.1} parent=23 // pred_fallthru
          _
      $region24: #{tpu_custom_call.1} parent=5 // pred_fallthru
        _
      %p191 = scmp.le.s32.totalorder 1, %s16
      %p192 = scmp.lt.s32.totalorder %s16, 3
      %p193 = pnand %p191, %p192
      %p194 = pneg %p193
      // Predicated region
      $region29: #{tpu_custom_call.1} parent=5 // pred_check
        _
      $region30: #{tpu_custom_call.1} parent=5 // pred_check_branch
        %196 = sbr.rel (%p193) target = $region32
      $region31: #{tpu_custom_call.1} parent=5 // pred_region
        %s197 = ssub.s32 %s16, 1
        %s198 = sand.u32 %s43, 1
        %s199 = scalar_lea.sflag [#allocation3], %s198
        %s200 = sand.u32 %s43, 1
        %s201 = smul.addr %s200, 576
        %s202 = scalar_lea.vmem [#allocation2], %s201
        // Predicated region
        $region33: #{tpu_custom_call.1} parent=31 // pred_check
          %p203 = pneg %p56
        $region34: #{tpu_custom_call.1} parent=31 // pred_check_branch
          %205 = sbr.rel (%p203) target = $region36
        $region35: #{tpu_custom_call.1} parent=31 // pred_region
          %206 = dma.done %s199, 9216
        $region36: #{tpu_custom_call.1} parent=31 // pred_fallthru
          _
        // Predicated region
        $region37: #{tpu_custom_call.1} parent=31 // pred_check
          %p207 = pneg %p77
        $region38: #{tpu_custom_call.1} parent=31 // pred_check_branch
          %209 = sbr.rel (%p207) target = $region40
        $region39: #{tpu_custom_call.1} parent=31 // pred_region
          %210 = dma.done [#allocation6], 192
        $region40: #{tpu_custom_call.1} parent=31 // pred_fallthru
          _
        // Predicated region
        $region41: #{tpu_custom_call.1} parent=31 // pred_check
          %p211 = pneg %p98
        $region42: #{tpu_custom_call.1} parent=31 // pred_check_branch
          %213 = sbr.rel (%p211) target = $region44
        $region43: #{tpu_custom_call.1} parent=31 // pred_region
          %214 = dma.done [#allocation6], 64
        $region44: #{tpu_custom_call.1} parent=31 // pred_fallthru
          _
        %s215 = sand.u32 %s43, 1
        %s216 = scalar_lea.sflag [#allocation3], %s215
        %s217 = sand.u32 %s43, 1
        %s218 = smul.addr %s217, 576
        %s219 = scalar_lea.vmem [#allocation2], %s218
        %p220 = pneg %p56
        %p221 = pneg %p53
        %p222 = pneg %p77
        %p223 = pneg %p74
        %p224 = pneg %p98
        %p225 = pneg %p95
        %p226 = pneg %p126
        %p227 = pneg %p123
        %s228 = sand.u32 %s113, 1
        %s229 = scalar_lea.sflag [#allocation4], %s228
        %s230 = sand.u32 %s113, 1
        %s231 = smul.addr %s230, 64
        %s232 = scalar_lea.vmem [#allocation8], %s231
        %s233 = sadd.s32 %s25, %s26
        %s234 = smul.u32 8, %s26
        %v235 = vld [vmem:[%s202] sm:$0xff]
        %v236 = vld [vmem:[%s202 + $0x10] sm:$0xff]
        %v237 = vld [vmem:[%s202 + $0x20] sm:$0xff]
        %v238 = vld [vmem:[%s202 + $0x30] sm:$0xff]
        %v239 = vld [vmem:[%s202 + $0x40] sm:$0xff]
        %v240 = vld [vmem:[%s202 + $0x50] sm:$0xff]
        %v241 = vld [vmem:[%s202 + $0x60] sm:$0xff]
        %v242 = vld [vmem:[%s202 + $0x70] sm:$0xff]
        %v243 = vld [vmem:[#allocation5] sm:$0x1]
        %v244 = vlaneseq
        %v245 = vshrl.u32 %v244, 7
        %v246 = vsub.s32 0, %v245
        %v247 = vrot.slane %v243, %v246
        %v248 = vmul.f32 %v235, %v247
        %v249 = vmul.f32 %v236, %v247
        %v250 = vmul.f32 %v237, %v247
        %v251 = vmul.f32 %v238, %v247
        %v252 = vmul.f32 %v239, %v247
        %v253 = vmul.f32 %v240, %v247
        %v254 = vmul.f32 %v241, %v247
        %v255 = vmul.f32 %v242, %v247
        %s256 = scalar_lea.vmem %s202, 144 [#allocation2]
        %v257 = vld [vmem:[%s256] sm:$0xff]
        %v258 = vld [vmem:[%s256 + $0x10] sm:$0xff]
        %v259 = vld [vmem:[%s256 + $0x20] sm:$0xff]
        %v260 = vld [vmem:[%s256 + $0x30] sm:$0xff]
        %v261 = vld [vmem:[%s256 + $0x40] sm:$0xff]
        %v262 = vld [vmem:[%s256 + $0x50] sm:$0xff]
        %v263 = vld [vmem:[%s256 + $0x60] sm:$0xff]
        %v264 = vld [vmem:[%s256 + $0x70] sm:$0xff]
        %v265 = vld [vmem:[#allocation5 + $0x1] sm:$0x1]
        %v266 = vlaneseq
        %v267 = vshrl.u32 %v266, 7
        %v268 = vsub.s32 0, %v267
        %v269 = vrot.slane %v265, %v268
        %v270 = vmul.f32 %v257, %v269
        %v271 = vmul.f32 %v258, %v269
        %v272 = vmul.f32 %v259, %v269
        %v273 = vmul.f32 %v260, %v269
        %v274 = vmul.f32 %v261, %v269
        %v275 = vmul.f32 %v262, %v269
        %v276 = vmul.f32 %v263, %v269
        %v277 = vmul.f32 %v264, %v269
        %v278 = vadd.f32 %v248, %v270
        %v279 = vadd.f32 %v249, %v271
        %v280 = vadd.f32 %v250, %v272
        %v281 = vadd.f32 %v251, %v273
        %v282 = vadd.f32 %v252, %v274
        %v283 = vadd.f32 %v253, %v275
        %v284 = vadd.f32 %v254, %v276
        %v285 = vadd.f32 %v255, %v277
        %v286 = vld [vmem:[%s202 + $0x1] sm:$0xff]
        %v287 = vld [vmem:[%s202 + $0x11] sm:$0xff]
        %v288 = vld [vmem:[%s202 + $0x21] sm:$0xff]
        %v289 = vld [vmem:[%s202 + $0x31] sm:$0xff]
        %v290 = vld [vmem:[%s202 + $0x41] sm:$0xff]
        %v291 = vld [vmem:[%s202 + $0x51] sm:$0xff]
        %v292 = vld [vmem:[%s202 + $0x61] sm:$0xff]
        %v293 = vld [vmem:[%s202 + $0x71] sm:$0xff]
        %v294 = vld [vmem:[#allocation5 + $0x2] sm:$0x1]
        %v295 = vlaneseq
        %v296 = vshrl.u32 %v295, 7
        %v297 = vsub.s32 0, %v296
        %v298 = vrot.slane %v294, %v297
        %v299 = vmul.f32 %v286, %v298
        %v300 = vmul.f32 %v287, %v298
        %v301 = vmul.f32 %v288, %v298
        %v302 = vmul.f32 %v289, %v298
        %v303 = vmul.f32 %v290, %v298
        %v304 = vmul.f32 %v291, %v298
        %v305 = vmul.f32 %v292, %v298
        %v306 = vmul.f32 %v293, %v298
        %s307 = scalar_lea.vmem %s202, 288 [#allocation2]
        %v308 = vld [vmem:[%s307] sm:$0xff]
        %v309 = vld [vmem:[%s307 + $0x10] sm:$0xff]
        %v310 = vld [vmem:[%s307 + $0x20] sm:$0xff]
        %v311 = vld [vmem:[%s307 + $0x30] sm:$0xff]
        %v312 = vld [vmem:[%s307 + $0x40] sm:$0xff]
        %v313 = vld [vmem:[%s307 + $0x50] sm:$0xff]
        %v314 = vld [vmem:[%s307 + $0x60] sm:$0xff]
        %v315 = vld [vmem:[%s307 + $0x70] sm:$0xff]
        %s316 = scalar_lea.vmem [#allocation5], 4
        %v317 = vld [vmem:[%s316] sm:$0x1]
        %v318 = vlaneseq
        %v319 = vshrl.u32 %v318, 7
        %v320 = vsub.s32 0, %v319
        %v321 = vrot.slane %v317, %v320
        %v322 = vmul.f32 %v308, %v321
        %v323 = vmul.f32 %v309, %v321
        %v324 = vmul.f32 %v310, %v321
        %v325 = vmul.f32 %v311, %v321
        %v326 = vmul.f32 %v312, %v321
        %v327 = vmul.f32 %v313, %v321
        %v328 = vmul.f32 %v314, %v321
        %v329 = vmul.f32 %v315, %v321
        %v330 = vadd.f32 %v299, %v322
        %v331 = vadd.f32 %v300, %v323
        %v332 = vadd.f32 %v301, %v324
        %v333 = vadd.f32 %v302, %v325
        %v334 = vadd.f32 %v303, %v326
        %v335 = vadd.f32 %v304, %v327
        %v336 = vadd.f32 %v305, %v328
        %v337 = vadd.f32 %v306, %v329
        %v338 = vadd.f32 %v278, %v330
        %v339 = vadd.f32 %v279, %v331
        %v340 = vadd.f32 %v280, %v332
        %v341 = vadd.f32 %v281, %v333
        %v342 = vadd.f32 %v282, %v334
        %v343 = vadd.f32 %v283, %v335
        %v344 = vadd.f32 %v284, %v336
        %v345 = vadd.f32 %v285, %v337
        %s346 = scalar_lea.vmem %s202, 432 [#allocation2]
        %v347 = vld [vmem:[%s346] sm:$0xff]
        %v348 = vld [vmem:[%s346 + $0x10] sm:$0xff]
        %v349 = vld [vmem:[%s346 + $0x20] sm:$0xff]
        %v350 = vld [vmem:[%s346 + $0x30] sm:$0xff]
        %v351 = vld [vmem:[%s346 + $0x40] sm:$0xff]
        %v352 = vld [vmem:[%s346 + $0x50] sm:$0xff]
        %v353 = vld [vmem:[%s346 + $0x60] sm:$0xff]
        %v354 = vld [vmem:[%s346 + $0x70] sm:$0xff]
        %v355 = vld [vmem:[%s316 + $0x1] sm:$0x1]
        %v356 = vlaneseq
        %v357 = vshrl.u32 %v356, 7
        %v358 = vsub.s32 0, %v357
        %v359 = vrot.slane %v355, %v358
        %v360 = vmul.f32 %v347, %v359
        %v361 = vmul.f32 %v348, %v359
        %v362 = vmul.f32 %v349, %v359
        %v363 = vmul.f32 %v350, %v359
        %v364 = vmul.f32 %v351, %v359
        %v365 = vmul.f32 %v352, %v359
        %v366 = vmul.f32 %v353, %v359
        %v367 = vmul.f32 %v354, %v359
        %v368 = vld [vmem:[%s307 + $0x1] sm:$0xff]
        %v369 = vld [vmem:[%s307 + $0x11] sm:$0xff]
        %v370 = vld [vmem:[%s307 + $0x21] sm:$0xff]
        %v371 = vld [vmem:[%s307 + $0x31] sm:$0xff]
        %v372 = vld [vmem:[%s307 + $0x41] sm:$0xff]
        %v373 = vld [vmem:[%s307 + $0x51] sm:$0xff]
        %v374 = vld [vmem:[%s307 + $0x61] sm:$0xff]
        %v375 = vld [vmem:[%s307 + $0x71] sm:$0xff]
        %v376 = vld [vmem:[%s316 + $0x2] sm:$0x1]
        %v377 = vlaneseq
        %v378 = vshrl.u32 %v377, 7
        %v379 = vsub.s32 0, %v378
        %v380 = vrot.slane %v376, %v379
        %v381 = vmul.f32 %v368, %v380
        %v382 = vmul.f32 %v369, %v380
        %v383 = vmul.f32 %v370, %v380
        %v384 = vmul.f32 %v371, %v380
        %v385 = vmul.f32 %v372, %v380
        %v386 = vmul.f32 %v373, %v380
        %v387 = vmul.f32 %v374, %v380
        %v388 = vmul.f32 %v375, %v380
        %v389 = vadd.f32 %v360, %v381
        %v390 = vadd.f32 %v361, %v382
        %v391 = vadd.f32 %v362, %v383
        %v392 = vadd.f32 %v363, %v384
        %v393 = vadd.f32 %v364, %v385
        %v394 = vadd.f32 %v365, %v386
        %v395 = vadd.f32 %v366, %v387
        %v396 = vadd.f32 %v367, %v388
        %s397 = scalar_lea.vmem %s202, 16 [#allocation2]
        %v398 = vld [vmem:[%s397] sm:$0xff]
        %v399 = vld [vmem:[%s397 + $0x10] sm:$0xff]
        %v400 = vld [vmem:[%s397 + $0x20] sm:$0xff]
        %v401 = vld [vmem:[%s397 + $0x30] sm:$0xff]
        %v402 = vld [vmem:[%s397 + $0x40] sm:$0xff]
        %v403 = vld [vmem:[%s397 + $0x50] sm:$0xff]
        %v404 = vld [vmem:[%s397 + $0x60] sm:$0xff]
        %v405 = vld [vmem:[%s397 + $0x70] sm:$0xff]
        %s406 = scalar_lea.vmem [#allocation5], 8
        %v407 = vld [vmem:[%s406] sm:$0x1]
        %v408 = vlaneseq
        %v409 = vshrl.u32 %v408, 7
        %v410 = vsub.s32 0, %v409
        %v411 = vrot.slane %v407, %v410
        %v412 = vmul.f32 %v398, %v411
        %v413 = vmul.f32 %v399, %v411
        %v414 = vmul.f32 %v400, %v411
        %v415 = vmul.f32 %v401, %v411
        %v416 = vmul.f32 %v402, %v411
        %v417 = vmul.f32 %v403, %v411
        %v418 = vmul.f32 %v404, %v411
        %v419 = vmul.f32 %v405, %v411
        %s420 = scalar_lea.vmem %s202, 160 [#allocation2]
        %v421 = vld [vmem:[%s420] sm:$0xff]
        %v422 = vld [vmem:[%s420 + $0x10] sm:$0xff]
        %v423 = vld [vmem:[%s420 + $0x20] sm:$0xff]
        %v424 = vld [vmem:[%s420 + $0x30] sm:$0xff]
        %v425 = vld [vmem:[%s420 + $0x40] sm:$0xff]
        %v426 = vld [vmem:[%s420 + $0x50] sm:$0xff]
        %v427 = vld [vmem:[%s420 + $0x60] sm:$0xff]
        %v428 = vld [vmem:[%s420 + $0x70] sm:$0xff]
        %v429 = vld [vmem:[%s406 + $0x1] sm:$0x1]
        %v430 = vlaneseq
        %v431 = vshrl.u32 %v430, 7
        %v432 = vsub.s32 0, %v431
        %v433 = vrot.slane %v429, %v432
        %v434 = vmul.f32 %v421, %v433
        %v435 = vmul.f32 %v422, %v433
        %v436 = vmul.f32 %v423, %v433
        %v437 = vmul.f32 %v424, %v433
        %v438 = vmul.f32 %v425, %v433
        %v439 = vmul.f32 %v426, %v433
        %v440 = vmul.f32 %v427, %v433
        %v441 = vmul.f32 %v428, %v433
        %v442 = vld [vmem:[%s397 + $0x1] sm:$0xff]
        %v443 = vld [vmem:[%s397 + $0x11] sm:$0xff]
        %v444 = vld [vmem:[%s397 + $0x21] sm:$0xff]
        %v445 = vld [vmem:[%s397 + $0x31] sm:$0xff]
        %v446 = vld [vmem:[%s397 + $0x41] sm:$0xff]
        %v447 = vld [vmem:[%s397 + $0x51] sm:$0xff]
        %v448 = vld [vmem:[%s397 + $0x61] sm:$0xff]
        %v449 = vld [vmem:[%s397 + $0x71] sm:$0xff]
        %v450 = vld [vmem:[%s406 + $0x2] sm:$0x1]
        %v451 = vlaneseq
        %v452 = vshrl.u32 %v451, 7
        %v453 = vsub.s32 0, %v452
        %v454 = vrot.slane %v450, %v453
        %v455 = vmul.f32 %v442, %v454
        %v456 = vmul.f32 %v443, %v454
        %v457 = vmul.f32 %v444, %v454
        %v458 = vmul.f32 %v445, %v454
        %v459 = vmul.f32 %v446, %v454
        %v460 = vmul.f32 %v447, %v454
        %v461 = vmul.f32 %v448, %v454
        %v462 = vmul.f32 %v449, %v454
        %v463 = vadd.f32 %v434, %v455
        %v464 = vadd.f32 %v435, %v456
        %v465 = vadd.f32 %v436, %v457
        %v466 = vadd.f32 %v437, %v458
        %v467 = vadd.f32 %v438, %v459
        %v468 = vadd.f32 %v439, %v460
        %v469 = vadd.f32 %v440, %v461
        %v470 = vadd.f32 %v441, %v462
        %v471 = vadd.f32 %v412, %v463
        %v472 = vadd.f32 %v413, %v464
        %v473 = vadd.f32 %v414, %v465
        %v474 = vadd.f32 %v415, %v466
        %v475 = vadd.f32 %v416, %v467
        %v476 = vadd.f32 %v417, %v468
        %v477 = vadd.f32 %v418, %v469
        %v478 = vadd.f32 %v419, %v470
        %v479 = vadd.f32 %v389, %v471
        %v480 = vadd.f32 %v390, %v472
        %v481 = vadd.f32 %v391, %v473
        %v482 = vadd.f32 %v392, %v474
        %v483 = vadd.f32 %v393, %v475
        %v484 = vadd.f32 %v394, %v476
        %v485 = vadd.f32 %v395, %v477
        %v486 = vadd.f32 %v396, %v478
        %v487 = vadd.f32 %v338, %v479
        %v488 = vadd.f32 %v339, %v480
        %v489 = vadd.f32 %v340, %v481
        %v490 = vadd.f32 %v341, %v482
        %v491 = vadd.f32 %v342, %v483
        %v492 = vadd.f32 %v343, %v484
        %v493 = vadd.f32 %v344, %v485
        %v494 = vadd.f32 %v345, %v486
        %v495 = vld [vmem:[#allocation7] sm:$0x1]
        %497 = vset.pattern.permute.xlu0 0
        %498 = vperm.xlu0 %497, %v487
        %v499 = vpop.permute.xlu0 %498
        %502 = vset.pattern.permute.xlu0 0
        %503 = vperm.xlu0 %502, %v488
        %v504 = vpop.permute.xlu0 %503
        %507 = vset.pattern.permute.xlu0 0
        %508 = vperm.xlu0 %507, %v489
        %v509 = vpop.permute.xlu0 %508
        %512 = vset.pattern.permute.xlu0 0
        %513 = vperm.xlu0 %512, %v490
        %v514 = vpop.permute.xlu0 %513
        %517 = vset.pattern.permute.xlu0 0
        %518 = vperm.xlu0 %517, %v491
        %v519 = vpop.permute.xlu0 %518
        %522 = vset.pattern.permute.xlu0 0
        %523 = vperm.xlu0 %522, %v492
        %v524 = vpop.permute.xlu0 %523
        %527 = vset.pattern.permute.xlu0 0
        %528 = vperm.xlu0 %527, %v493
        %v529 = vpop.permute.xlu0 %528
        %532 = vset.pattern.permute.xlu0 0
        %533 = vperm.xlu0 %532, %v494
        %v534 = vpop.permute.xlu0 %533
        %v536 = vlaneseq
        %v537 = vshrl.u32 %v536, 7
        %v538 = vsub.s32 0, %v537
        %v539 = vrot.slane %v495, %v538
        %v540 = vmul.f32 %v499, %v539
        %v541 = vmul.f32 %v504, %v539
        %v542 = vmul.f32 %v509, %v539
        %v543 = vmul.f32 %v514, %v539
        %v544 = vmul.f32 %v519, %v539
        %v545 = vmul.f32 %v524, %v539
        %v546 = vmul.f32 %v529, %v539
        %v547 = vmul.f32 %v534, %v539
        %v548 = vld [vmem:[#allocation7 + $0x1] sm:$0x1]
        %549 = vset.pattern.permute.xlu0 1
        %550 = vperm.xlu0 %549, %v487
        %v551 = vpop.permute.xlu0 %550
        %553 = vset.pattern.permute.xlu0 1
        %554 = vperm.xlu0 %553, %v488
        %v555 = vpop.permute.xlu0 %554
        %557 = vset.pattern.permute.xlu0 1
        %558 = vperm.xlu0 %557, %v489
        %v559 = vpop.permute.xlu0 %558
        %561 = vset.pattern.permute.xlu0 1
        %562 = vperm.xlu0 %561, %v490
        %v563 = vpop.permute.xlu0 %562
        %565 = vset.pattern.permute.xlu0 1
        %566 = vperm.xlu0 %565, %v491
        %v567 = vpop.permute.xlu0 %566
        %569 = vset.pattern.permute.xlu0 1
        %570 = vperm.xlu0 %569, %v492
        %v571 = vpop.permute.xlu0 %570
        %573 = vset.pattern.permute.xlu0 1
        %574 = vperm.xlu0 %573, %v493
        %v575 = vpop.permute.xlu0 %574
        %577 = vset.pattern.permute.xlu0 1
        %578 = vperm.xlu0 %577, %v494
        %v579 = vpop.permute.xlu0 %578
        %v581 = vlaneseq
        %v582 = vshrl.u32 %v581, 7
        %v583 = vsub.s32 0, %v582
        %v584 = vrot.slane %v548, %v583
        %v585 = vmul.f32 %v551, %v584
        %v586 = vmul.f32 %v555, %v584
        %v587 = vmul.f32 %v559, %v584
        %v588 = vmul.f32 %v563, %v584
        %v589 = vmul.f32 %v567, %v584
        %v590 = vmul.f32 %v571, %v584
        %v591 = vmul.f32 %v575, %v584
        %v592 = vmul.f32 %v579, %v584
        %v593 = vadd.f32 %v540, %v585
        %v594 = vadd.f32 %v541, %v586
        %v595 = vadd.f32 %v542, %v587
        %v596 = vadd.f32 %v543, %v588
        %v597 = vadd.f32 %v544, %v589
        %v598 = vadd.f32 %v545, %v590
        %v599 = vadd.f32 %v546, %v591
        %v600 = vadd.f32 %v547, %v592
        %v601 = vld [vmem:[#allocation7 + $0x2] sm:$0x1]
        %602 = vset.pattern.permute.xlu0 2
        %603 = vperm.xlu0 %602, %v487
        %v604 = vpop.permute.xlu0 %603
        %606 = vset.pattern.permute.xlu0 2
        %607 = vperm.xlu0 %606, %v488
        %v608 = vpop.permute.xlu0 %607
        %610 = vset.pattern.permute.xlu0 2
        %611 = vperm.xlu0 %610, %v489
        %v612 = vpop.permute.xlu0 %611
        %614 = vset.pattern.permute.xlu0 2
        %615 = vperm.xlu0 %614, %v490
        %v616 = vpop.permute.xlu0 %615
        %618 = vset.pattern.permute.xlu0 2
        %619 = vperm.xlu0 %618, %v491
        %v620 = vpop.permute.xlu0 %619
        %622 = vset.pattern.permute.xlu0 2
        %623 = vperm.xlu0 %622, %v492
        %v624 = vpop.permute.xlu0 %623
        %626 = vset.pattern.permute.xlu0 2
        %627 = vperm.xlu0 %626, %v493
        %v628 = vpop.permute.xlu0 %627
        %630 = vset.pattern.permute.xlu0 2
        %631 = vperm.xlu0 %630, %v494
        %v632 = vpop.permute.xlu0 %631
        %v634 = vlaneseq
        %v635 = vshrl.u32 %v634, 7
        %v636 = vsub.s32 0, %v635
        %v637 = vrot.slane %v601, %v636
        %v638 = vmul.f32 %v604, %v637
        %v639 = vmul.f32 %v608, %v637
        %v640 = vmul.f32 %v612, %v637
        %v641 = vmul.f32 %v616, %v637
        %v642 = vmul.f32 %v620, %v637
        %v643 = vmul.f32 %v624, %v637
        %v644 = vmul.f32 %v628, %v637
        %v645 = vmul.f32 %v632, %v637
        %v646 = vld [vmem:[#allocation7 + $0x3] sm:$0x1]
        %647 = vset.pattern.permute.xlu0 3
        %648 = vperm.xlu0 %647, %v487
        %v649 = vpop.permute.xlu0 %648
        %651 = vset.pattern.permute.xlu0 3
        %652 = vperm.xlu0 %651, %v488
        %v653 = vpop.permute.xlu0 %652
        %655 = vset.pattern.permute.xlu0 3
        %656 = vperm.xlu0 %655, %v489
        %v657 = vpop.permute.xlu0 %656
        %659 = vset.pattern.permute.xlu0 3
        %660 = vperm.xlu0 %659, %v490
        %v661 = vpop.permute.xlu0 %660
        %663 = vset.pattern.permute.xlu0 3
        %664 = vperm.xlu0 %663, %v491
        %v665 = vpop.permute.xlu0 %664
        %667 = vset.pattern.permute.xlu0 3
        %668 = vperm.xlu0 %667, %v492
        %v669 = vpop.permute.xlu0 %668
        %671 = vset.pattern.permute.xlu0 3
        %672 = vperm.xlu0 %671, %v493
        %v673 = vpop.permute.xlu0 %672
        %675 = vset.pattern.permute.xlu0 3
        %676 = vperm.xlu0 %675, %v494
        %v677 = vpop.permute.xlu0 %676
        %v679 = vlaneseq
        %v680 = vshrl.u32 %v679, 7
        %v681 = vsub.s32 0, %v680
        %v682 = vrot.slane %v646, %v681
        %v683 = vmul.f32 %v649, %v682
        %v684 = vmul.f32 %v653, %v682
        %v685 = vmul.f32 %v657, %v682
        %v686 = vmul.f32 %v661, %v682
        %v687 = vmul.f32 %v665, %v682
        %v688 = vmul.f32 %v669, %v682
        %v689 = vmul.f32 %v673, %v682
        %v690 = vmul.f32 %v677, %v682
        %v691 = vadd.f32 %v638, %v683
        %v692 = vadd.f32 %v639, %v684
        %v693 = vadd.f32 %v640, %v685
        %v694 = vadd.f32 %v641, %v686
        %v695 = vadd.f32 %v642, %v687
        %v696 = vadd.f32 %v643, %v688
        %v697 = vadd.f32 %v644, %v689
        %v698 = vadd.f32 %v645, %v690
        %v699 = vadd.f32 %v593, %v691
        %v700 = vadd.f32 %v594, %v692
        %v701 = vadd.f32 %v595, %v693
        %v702 = vadd.f32 %v596, %v694
        %v703 = vadd.f32 %v597, %v695
        %v704 = vadd.f32 %v598, %v696
        %v705 = vadd.f32 %v599, %v697
        %v706 = vadd.f32 %v600, %v698
        %vm707 = vcmask 64512
        %708 = vst.msk [vmem:[%s232] sm:$0xff] %vm707, %v699
        %709 = vst.msk [vmem:[%s232 + $0x8] sm:$0xff] %vm707, %v700
        %710 = vst.msk [vmem:[%s232 + $0x10] sm:$0xff] %vm707, %v701
        %711 = vst.msk [vmem:[%s232 + $0x18] sm:$0xff] %vm707, %v702
        %712 = vst.msk [vmem:[%s232 + $0x20] sm:$0xff] %vm707, %v703
        %713 = vst.msk [vmem:[%s232 + $0x28] sm:$0xff] %vm707, %v704
        %714 = vst.msk [vmem:[%s232 + $0x30] sm:$0xff] %vm707, %v705
        %715 = vst.msk [vmem:[%s232 + $0x38] sm:$0xff] %vm707, %v706
        %s716 = sand.u32 %s113, 1
        %s717 = scalar_lea.sflag [#allocation4], %s716
        %s718 = sand.u32 %s113, 1
        %s719 = smul.addr %s718, 64
        %s720 = scalar_lea.vmem [#allocation8], %s719
        // Predicated region
        $region45: #{tpu_custom_call.1} parent=31 // pred_check
          %p721 = pneg %p123
        $region46: #{tpu_custom_call.1} parent=31 // pred_check_branch
          %723 = sbr.rel (%p721) target = $region48
        $region47: #{tpu_custom_call.1} parent=31 // pred_region
          %s724 = smul.u32 8, %s26
          %s726 = ssub.s32 1024, 1024
          %727 = vsyncadd %s717, %s726
          %s728 = smul.addr %s25, 8
          %s729 = sadd.s32 %s724, %s728
          %s730 = smul.addr %s729, 128
          %s731 = scalar_lea.hbm %s3, %s730
          %s732 = sshll.u32 %s720, 4
          %s733 = int_to_ptr.vmem [resolvable:$true] %s732
          %738 = dma.vmem_to_hbm [thread:$0]  %s733, 1024, %s731, %s717, 128, 128, 8
        $region48: #{tpu_custom_call.1} parent=31 // pred_fallthru
          _
      $region32: #{tpu_custom_call.1} parent=5 // pred_fallthru
        _
      %p739 = scmp.le.s32.totalorder 2, %s16
      // Predicated region
      $region49: #{tpu_custom_call.1} parent=5 // pred_check
        %p740 = pneg %p739
      $region50: #{tpu_custom_call.1} parent=5 // pred_check_branch
        %742 = sbr.rel (%p740) target = $region52
      $region51: #{tpu_custom_call.1} parent=5 // pred_region
        %s743 = ssub.s32 %s16, 2
        // Predicated region
        $region53: #{tpu_custom_call.1} parent=51 // pred_check
          %p744 = pneg %p129
        $region54: #{tpu_custom_call.1} parent=51 // pred_check_branch
          %746 = sbr.rel (%p744) target = $region56
        $region55: #{tpu_custom_call.1} parent=51 // pred_region
          %s747 = sand.u32 %s114, 1
          %s748 = scalar_lea.sflag [#allocation4], %s747
          %s749 = sand.u32 %s114, 1
          %s750 = smul.addr %s749, 64
          %s751 = scalar_lea.vmem [#allocation8], %s750
          %752 = dma.done %s748, 1024
        $region56: #{tpu_custom_call.1} parent=51 // pred_fallthru
          _
      $region52: #{tpu_custom_call.1} parent=5 // pred_fallthru
        _
    $region6: #{tpu_custom_call.1} parent=1 // loop_footer
      %s20 = sadd.s32 1, %s16
    $region7: #{tpu_custom_call.1} parent=1 // loop_footer_branch
      %15 = sbr.rel target = $region3
    $region8: #{tpu_custom_call.1} parent=1 // loop_exit
      _
    %753 = vsyncpa [#allocation3], 1
    %s754 = scalar_lea.sflag [#allocation3], 1
    %755 = vsyncpa %s754, 1
    %756 = vsyncpa [#allocation6], 1
    %757 = vsyncpa [#allocation4], 1
    %s758 = scalar_lea.sflag [#allocation4], 1
    %759 = vsyncpa %s758, 1

</llo_original>
